<compile_context>
chip_gen: v7x
topology: tpu7x:2x2x1
jax: 0.10.0
libtpu: 0.0.40
codegen_flags: <defaults>
</compile_context>

<pallas_src>
import jax
import jax.numpy as jnp
from jax.experimental import pallas as pl
from jax.experimental.pallas import tpu as pltpu


NUM_OPS = 4  # brightness, contrast, invert, solarize


def _augment_kernel(gates_ref, params_ref, img_ref, mean_ref, out_ref):
    """gates_ref : SMEM i32[NUM_OPS]  (1 -> op fires, 0 -> passthrough)
       params_ref: SMEM f32[3]        (brightness factor, contrast factor, solarize thresh)
       img_ref   : VMEM (br, bc) lane-dense tile of the flattened batch
       mean_ref  : VMEM (br, 1) precomputed per-image mean (one scalar per row)
       out_ref   : VMEM (br, bc) output tile."""
    # Hoist all scalar reads up front (SMEM reads before any vector work).
    g0 = gates_ref[0]
    g1 = gates_ref[1]
    g2 = gates_ref[2]
    g3 = gates_ref[3]
    bright = params_ref[0]
    contrast = params_ref[1]
    thresh = params_ref[2]

    x = img_ref[...].astype(jnp.float32)

    # --- op 0: brightness (x * factor); gate folded into the scalar scale ---
    scale = jnp.where(g0 > 0, bright, jnp.float32(1.0))
    x = jnp.clip(x * scale, 0.0, 1.0)

    # --- op 1: contrast ((x - mean) * factor + mean); gate folded into factor ---
    # `mean` is the per-image mean of the brightness-adjusted image, computed
    # in the wrapper (whole-image mean).
    # TODO(synk): PIL ImageEnhance.Contrast blends against the *grayscale*
    # (luminance-weighted) mean; we use the plain per-image mean here.
    factor = jnp.where(g1 > 0, contrast, jnp.float32(1.0))
    mean = mean_ref[...]                           # (br, 1), broadcasts over lanes
    x = jnp.clip((x - mean) * factor + mean, 0.0, 1.0)

    # --- op 2: invert (1 - x) ---
    x = jnp.where(g2 > 0, 1.0 - x, x)

    # --- op 3: solarize (invert pixels above threshold); gate merged into mask ---
    sol_mask = jnp.logical_and(g3 > 0, x > thresh)
    x = jnp.where(sol_mask, 1.0 - x, x)

    out_ref[...] = x.astype(out_ref.dtype)


def augmentor_transform(img, gates, params, *, block_rows=256, block_cols=2048):
    """img: (N, C, H, W) float; gates: (NUM_OPS,) int32; params: (3,) f32."""
    N, C, H, W = img.shape
    R, S = N * C, H * W

    # Lane-dense flattening: last dim H*W maps onto the 128-lane axis.
    # (N,C,H,W) -> (N*C, H*W) is a contiguous reshape (no transpose/copy).
    x2d = img.reshape(R, S)

    # Per-image mean of the brightness-adjusted image (sequential-pipeline
    # semantics), expanded to one scalar per flattened row.  Single fused XLA
    # reduction over the image; negligible vs. the kernel's HBM traffic.
    b_scale = jnp.where(gates[0] > 0, params[0], jnp.float32(1.0))
    mean_img = jnp.mean(
        jnp.clip(img.astype(jnp.float32) * b_scale, 0.0, 1.0), axis=(1, 2, 3)
    )                                                              # (N,)
    mean_rows = jnp.repeat(mean_img, C).reshape(R, 1)              # (R, 1)

    # Tile sizes: full extent when small, otherwise (8, 128)-aligned big tiles.
    br = R if R <= block_rows else block_rows        # block_rows is a mult of 8
    bc = S if S <= block_cols else block_cols        # block_cols is a mult of 128
    grid = (pl.cdiv(R, br), pl.cdiv(S, bc))

    # Explicit VMEM budget: double-buffered in/out tiles + mean + slack,
    # kept well under v7x's 64 MiB physical VMEM.
    block_bytes = br * bc * 4
    vmem_limit = min(max(4 * block_bytes + (2 << 20), 8 << 20), 48 << 20)

    out2d = pl.pallas_call(
        _augment_kernel,
        out_shape=jax.ShapeDtypeStruct((R, S), img.dtype),
        grid=grid,
        in_specs=[
            pl.BlockSpec(memory_space=pltpu.SMEM),                    # gates
            pl.BlockSpec(memory_space=pltpu.SMEM),                    # op params
            pl.BlockSpec((br, bc), lambda i, j: (i, j)),              # image tile
            pl.BlockSpec((br, 1), lambda i, j: (i, 0)),               # per-row mean
        ],
        out_specs=pl.BlockSpec((br, bc), lambda i, j: (i, j)),
        compiler_params=pltpu.CompilerParams(
            dimension_semantics=("parallel", "parallel"),
            vmem_limit_bytes=vmem_limit,
        ),
    )(gates, params, x2d, mean_rows)

    return out2d.reshape(N, C, H, W)


def forward(img, key):
    """Mirrors _AugmentorTransform.forward: draw one uniform per op and gate it."""
    # Synthetic deterministic pipeline (probability, parameters).
    # TODO(synk): the real Augmentor pipeline's op list/params are external;
    # this fixed 4-op pipeline stands in for it.
    probs = jnp.array([0.8, 0.7, 0.5, 0.3], dtype=jnp.float32)
    params = jnp.array([1.2, 0.9, 0.5], dtype=jnp.float32)  # brightness, contrast, solarize thresh

    # `if torch.rand(1) < operation.probability:` -> per-op Bernoulli gates.
    u = jax.random.uniform(key, (NUM_OPS,), dtype=jnp.float32)
    gates = (u < probs).astype(jnp.int32)

    return augmentor_transform(img, gates, params)


if __name__ == "__main__":
    key = jax.random.PRNGKey(0)
    k_img, k_gate = jax.random.split(key)

    # Small NCHW image batch, values in [0, 1] like a normalized image.
    img = jax.random.uniform(k_img, (2, 4, 16, 16), dtype=jnp.float32)

    out = forward(img, k_gate)
    out = jax.block_until_ready(out)

    assert out.shape == img.shape and out.dtype == img.dtype
    assert bool(jnp.all(jnp.isfinite(out)))
    assert bool(jnp.all((out >= 0.0) & (out <= 1.0)))
    print("KERNEL_OK")
</pallas_src>

<mosaic_0001>
module attributes {stable_mosaic.version = 11 : i64} {
  func.func @_augment_kernel(%arg0: i32, %arg1: i32, %arg2: memref<4xi32, #tpu.memory_space<smem>>, %arg3: memref<3xf32, #tpu.memory_space<smem>>, %arg4: memref<8x256xf32, #tpu.memory_space<vmem>>, %arg5: memref<8x1xf32, #tpu.memory_space<vmem>>, %arg6: memref<8x256xf32, #tpu.memory_space<vmem>>) attributes {dimension_semantics = [#tpu.dimension_semantics<parallel>, #tpu.dimension_semantics<parallel>], iteration_bounds = array<i64: 1, 1>, scalar_prefetch = 0 : i64, scratch_operands = 0 : i64, tpu.core_type = #tpu.core_type<tc>, window_params = [{transform_indices = @transform_0, window_bounds = array<i64: 4>}, {transform_indices = @transform_1, window_bounds = array<i64: 3>}, {transform_indices = @transform_2, window_bounds = array<i64: 8, 256>}, {transform_indices = @transform_3, window_bounds = array<i64: 8, 1>}, {transform_indices = @transform_4, window_bounds = array<i64: 8, 256>}]} {
    %c0 = arith.constant 0 : index
    %0 = memref.load %arg2[%c0] : memref<4xi32, #tpu.memory_space<smem>>
    %c1 = arith.constant 1 : index
    %1 = memref.load %arg2[%c1] : memref<4xi32, #tpu.memory_space<smem>>
    %c2 = arith.constant 2 : index
    %2 = memref.load %arg2[%c2] : memref<4xi32, #tpu.memory_space<smem>>
    %c3 = arith.constant 3 : index
    %3 = memref.load %arg2[%c3] : memref<4xi32, #tpu.memory_space<smem>>
    %c0_0 = arith.constant 0 : index
    %4 = memref.load %arg3[%c0_0] : memref<3xf32, #tpu.memory_space<smem>>
    %c1_1 = arith.constant 1 : index
    %5 = memref.load %arg3[%c1_1] : memref<3xf32, #tpu.memory_space<smem>>
    %c2_2 = arith.constant 2 : index
    %6 = memref.load %arg3[%c2_2] : memref<3xf32, #tpu.memory_space<smem>>
    %c0_3 = arith.constant 0 : index
    %c0_4 = arith.constant 0 : index
    %7 = vector.load %arg4[%c0_3, %c0_4] : memref<8x256xf32, #tpu.memory_space<vmem>>, vector<8x256xf32>
    %c0_i32 = arith.constant 0 : i32
    %8 = arith.cmpi sgt, %0, %c0_i32 : i32
    %cst = arith.constant 1.000000e+00 : f32
    %9 = arith.select %8, %4, %cst : f32
    %10 = vector.broadcast %9 : f32 to vector<8x256xf32>
    %11 = arith.mulf %7, %10 : vector<8x256xf32>
    %cst_5 = arith.constant 0.000000e+00 : f32
    %cst_6 = arith.constant 1.000000e+00 : f32
    %12 = vector.broadcast %cst_5 : f32 to vector<8x256xf32>
    %13 = arith.maximumf %12, %11 : vector<8x256xf32>
    %14 = vector.broadcast %cst_6 : f32 to vector<8x256xf32>
    %15 = arith.minimumf %14, %13 : vector<8x256xf32>
    %c0_i32_7 = arith.constant 0 : i32
    %16 = arith.cmpi sgt, %1, %c0_i32_7 : i32
    %cst_8 = arith.constant 1.000000e+00 : f32
    %17 = arith.select %16, %5, %cst_8 : f32
    %c0_9 = arith.constant 0 : index
    %c0_10 = arith.constant 0 : index
    %18 = vector.load %arg5[%c0_9, %c0_10] : memref<8x1xf32, #tpu.memory_space<vmem>>, vector<8x1xf32>
    %19 = vector.broadcast %18 : vector<8x1xf32> to vector<8x256xf32>
    %20 = arith.subf %15, %19 : vector<8x256xf32>
    %21 = vector.broadcast %17 : f32 to vector<8x256xf32>
    %22 = arith.mulf %20, %21 : vector<8x256xf32>
    %23 = vector.broadcast %18 : vector<8x1xf32> to vector<8x256xf32>
    %24 = arith.addf %22, %23 : vector<8x256xf32>
    %cst_11 = arith.constant 0.000000e+00 : f32
    %cst_12 = arith.constant 1.000000e+00 : f32
    %25 = vector.broadcast %cst_11 : f32 to vector<8x256xf32>
    %26 = arith.maximumf %25, %24 : vector<8x256xf32>
    %27 = vector.broadcast %cst_12 : f32 to vector<8x256xf32>
    %28 = arith.minimumf %27, %26 : vector<8x256xf32>
    %c0_i32_13 = arith.constant 0 : i32
    %29 = arith.cmpi sgt, %2, %c0_i32_13 : i32
    %cst_14 = arith.constant 1.000000e+00 : f32
    %30 = vector.broadcast %cst_14 : f32 to vector<8x256xf32>
    %31 = arith.subf %30, %28 : vector<8x256xf32>
    %32 = arith.select %29, %31, %28 : vector<8x256xf32>
    %c0_i32_15 = arith.constant 0 : i32
    %33 = arith.cmpi sgt, %3, %c0_i32_15 : i32
    %34 = vector.broadcast %6 : f32 to vector<8x256xf32>
    %35 = arith.cmpf ogt, %32, %34 : vector<8x256xf32>
    %36 = vector.broadcast %33 : i1 to vector<8x256xi1>
    %37 = arith.andi %36, %35 : vector<8x256xi1>
    %cst_16 = arith.constant 1.000000e+00 : f32
    %38 = vector.broadcast %cst_16 : f32 to vector<8x256xf32>
    %39 = arith.subf %38, %32 : vector<8x256xf32>
    %40 = arith.select %37, %39, %32 : vector<8x256xi1>, vector<8x256xf32>
    %c0_17 = arith.constant 0 : index
    %c0_18 = arith.constant 0 : index
    %41 = vector.load %arg6[%c0_17, %c0_18] : memref<8x256xf32, #tpu.memory_space<vmem>>, vector<8x256xf32>
    tpu.vector_store %arg6[%c0_17, %c0_18], %40 {strides = array<i32>} : memref<8x256xf32, #tpu.memory_space<vmem>>, vector<8x256xf32>,
    return
  }
  func.func @transform_0(%arg0: i32, %arg1: i32) -> i32 {
    %c0_i32 = arith.constant 0 : i32
    %c0_i32_0 = arith.constant 0 : i32
    return %c0_i32 : i32
  }
  func.func @transform_1(%arg0: i32, %arg1: i32) -> i32 {
    %c0_i32 = arith.constant 0 : i32
    %c0_i32_0 = arith.constant 0 : i32
    return %c0_i32 : i32
  }
  func.func @transform_2(%arg0: i32, %arg1: i32) -> (i32, i32) {
    %c0_i32 = arith.constant 0 : i32
    return %arg0, %arg1 : i32, i32
  }
  func.func @transform_3(%arg0: i32, %arg1: i32) -> (i32, i32) {
    %c0_i32 = arith.constant 0 : i32
    %c0_i32_0 = arith.constant 0 : i32
    return %arg0, %c0_i32 : i32, i32
  }
  func.func @transform_4(%arg0: i32, %arg1: i32) -> (i32, i32) {
    %c0_i32 = arith.constant 0 : i32
    return %arg0, %arg1 : i32, i32
  }
}

</mosaic_0001>

<llo_original>
// kernel: tpu_custom_call.1
$region0: #{tpu_custom_call.1}
  #allocation0 [shape = 'u32[]', space=smem, size = 0x4, offset = 0x4, fixed_abs, tag = 'smem constant byte address 0x4 - core index']
  #allocation1 [shape = 'u32[144,128]{1,0:T(1,128)}', space=vmem, size = 0x12000, scoped, tag = 'internal scratch']
  %s0 = inlined_call_operand.hbm [shape: s32[4], index: 0, kind: input, shape index: {}]
  %s1 = inlined_call_operand.hbm [shape: f32[3], index: 1, kind: input, shape index: {}]
  %s2 = inlined_call_operand.vmem [shape: f32[8,256], index: 2, kind: input, shape index: {}]
  %s3 = inlined_call_operand.vmem [shape: f32[8,1], index: 3, kind: input, shape index: {}]
  %s4 = inlined_call_operand.hbm [shape: f32[8,256], index: 4, kind: output, shape index: {}]
  %s5 = sld [smem:[#allocation0]]
  $region34: #{tpu_custom_call.1} parent=0
    _
  %s7 = ssub.s32 1, %s5
  %s8 = scalar_select 0, %s7, %s5
  $region1: #{tpu_custom_call.1} parent=0
    #allocation2 [shape = 'u8[512]{0}', space=smem, size = 0x200, scoped, tag = 'input window, operand 0, single buffered']
    #allocation3 [shape = 's32[1]{0}', space=sflag, size = 0x4, scoped, tag = 'scoped memory for tpu_custom_call.1']
    #allocation4 [shape = 's32[1]{0}', space=sflag, size = 0x4, scoped, tag = 'scoped memory for tpu_custom_call.1']
    #allocation5 [shape = 'u8[512]{0}', space=smem, size = 0x200, scoped, tag = 'input window, operand 1, single buffered']
    #allocation6 [shape = 's32[1]{0}', space=sflag, size = 0x4, scoped, tag = 'scoped memory for tpu_custom_call.1']
    #allocation7 [shape = 'u8[8192]{0}', space=vmem, size = 0x2000, scoped, tag = 'output window, operand 0, single buffered']
    %9 = vsyncpa [#allocation4], 0
    %10 = vsyncpa [#allocation6], 0
    %11 = vsyncpa [#allocation3], 0
    // Predicated region
    $region2: #{tpu_custom_call.1} parent=1 // pred_check
      _
    $region3: #{tpu_custom_call.1} parent=1 // pred_check_branch
      %13 = sbr.rel (0) target = $region5
    $region4: #{tpu_custom_call.1} parent=1 // pred_region
      %s15 = ssub.s32 16, 16
      %16 = vsyncadd [#allocation4], %s15
      %19 = dma.hbm_to_smem %s0, 16, [#allocation2], [#allocation4]
    $region5: #{tpu_custom_call.1} parent=1 // pred_fallthru
      _
    // Predicated region
    $region6: #{tpu_custom_call.1} parent=1 // pred_check
      _
    $region7: #{tpu_custom_call.1} parent=1 // pred_check_branch
      %21 = sbr.rel (0) target = $region9
    $region8: #{tpu_custom_call.1} parent=1 // pred_region
      %s23 = ssub.s32 16, 16
      %24 = vsyncadd [#allocation6], %s23
      %27 = dma.hbm_to_smem %s1, 16, [#allocation5], [#allocation6]
    $region9: #{tpu_custom_call.1} parent=1 // pred_fallthru
      _
    // Predicated region
    $region10: #{tpu_custom_call.1} parent=1 // pred_check
      _
    $region11: #{tpu_custom_call.1} parent=1 // pred_check_branch
      %29 = sbr.rel (0) target = $region13
    $region12: #{tpu_custom_call.1} parent=1 // pred_region
      _
    $region13: #{tpu_custom_call.1} parent=1 // pred_fallthru
      _
    // Predicated region
    $region14: #{tpu_custom_call.1} parent=1 // pred_check
      _
    $region15: #{tpu_custom_call.1} parent=1 // pred_check_branch
      %31 = sbr.rel (0) target = $region17
    $region16: #{tpu_custom_call.1} parent=1 // pred_region
      _
    $region17: #{tpu_custom_call.1} parent=1 // pred_fallthru
      _
    // Predicated region
    $region18: #{tpu_custom_call.1} parent=1 // pred_check
      _
    $region19: #{tpu_custom_call.1} parent=1 // pred_check_branch
      %33 = sbr.rel (0) target = $region21
    $region20: #{tpu_custom_call.1} parent=1 // pred_region
      %34 = dma.done [#allocation4], 16
    $region21: #{tpu_custom_call.1} parent=1 // pred_fallthru
      _
    // Predicated region
    $region22: #{tpu_custom_call.1} parent=1 // pred_check
      _
    $region23: #{tpu_custom_call.1} parent=1 // pred_check_branch
      %36 = sbr.rel (0) target = $region25
    $region24: #{tpu_custom_call.1} parent=1 // pred_region
      %37 = dma.done [#allocation6], 16
    $region25: #{tpu_custom_call.1} parent=1 // pred_fallthru
      _
    %38 = sfence
    %s39 = sld [smem:[#allocation2]]
    %s40 = sld [smem:[#allocation2 + $0x1]]
    %s41 = sld [smem:[#allocation2 + $0x2]]
    %s42 = sld [smem:[#allocation2 + $0x3]]
    %s43 = sld [smem:[#allocation5]]
    %s44 = sld [smem:[#allocation5 + $0x1]]
    %s45 = sld [smem:[#allocation5 + $0x2]]
    %v46 = vld [vmem:[%s2] sm:$0xff]
    %v47 = vld [vmem:[%s2 + $0x8] sm:$0xff]
    %p48 = scmp.gt.s32.totalorder %s39, 0
    %s49 = scalar_select %p48, %s43, 1.0
    %v50 = vstv %s49
    %v51 = vmul.f32 %v46, %v50
    %v52 = vmul.f32 %v47, %v50
    %v53 = vmax.f32 %v51, 0.0
    %v54 = vmax.f32 %v52, 0.0
    %v55 = vmin.f32 %v53, 1.0
    %v56 = vmin.f32 %v54, 1.0
    %p57 = scmp.gt.s32.totalorder %s40, 0
    %s58 = scalar_select %p57, %s44, 1.0
    %v59 = vld [vmem:[%s3] sm:$0xff]
    %61 = vset.pattern.permute.xlu0 0
    %62 = vperm.xlu0 %61, %v59
    %v63 = vpop.permute.xlu0 %62
    %v65 = vsub.f32 %v55, %v63
    %v66 = vsub.f32 %v56, %v63
    %v67 = vstv %s58
    %v68 = vmul.f32 %v65, %v67
    %v69 = vmul.f32 %v66, %v67
    %v70 = vadd.f32 %v68, %v63
    %v71 = vadd.f32 %v69, %v63
    %v72 = vmax.f32 %v70, 0.0
    %v73 = vmax.f32 %v71, 0.0
    %v74 = vmin.f32 %v72, 1.0
    %v75 = vmin.f32 %v73, 1.0
    %p76 = scmp.gt.s32.totalorder %s41, 0
    %v77 = vsub.f32 1.0, %v74
    %v78 = vsub.f32 1.0, %v75
    %s79 = scalar_select %p76, 1, 0
    %v80 = vstv %s79
    %vm81 = vcmp.eq.s32.totalorder %v80, 1
    %v82 = vsel %vm81, %v77, %v74
    %v83 = vsel %vm81, %v78, %v75
    %p84 = scmp.gt.s32.totalorder %s42, 0
    %v85 = vstv %s45
    %vm86 = vcmp.gt.f32.partialorder %v82, %v85
    %vm87 = vcmp.gt.f32.partialorder %v83, %v85
    %s88 = scalar_select %p84, 1, 0
    %v89 = vstv %s88
    %vm90 = vcmp.eq.s32.totalorder %v89, 1
    %vm91 = vmand %vm90, %vm86
    %vm92 = vmand %vm90, %vm87
    %v93 = vsub.f32 1.0, %v82
    %v94 = vsub.f32 1.0, %v83
    %v95 = vsel %vm91, %v93, %v82
    %v96 = vsel %vm92, %v94, %v83
    %97 = vst [vmem:[#allocation7] sm:$0xff] %v95
    %98 = vst [vmem:[#allocation7 + $0x8] sm:$0xff] %v96
    // Predicated region
    $region26: #{tpu_custom_call.1} parent=1 // pred_check
      _
    $region27: #{tpu_custom_call.1} parent=1 // pred_check_branch
      %100 = sbr.rel (0) target = $region29
    $region28: #{tpu_custom_call.1} parent=1 // pred_region
      %s102 = ssub.s32 256, 256
      %103 = vsyncadd [#allocation3], %s102
      %s105 = sshll.u32 [#allocation7], 4
      %s106 = int_to_ptr.vmem [resolvable:$true] %s105
      %108 = dma.vmem_to_hbm [thread:$0]  %s106, 256, %s4, [#allocation3]
    $region29: #{tpu_custom_call.1} parent=1 // pred_fallthru
      _
    // Predicated region
    $region30: #{tpu_custom_call.1} parent=1 // pred_check
      _
    $region31: #{tpu_custom_call.1} parent=1 // pred_check_branch
      %110 = sbr.rel (0) target = $region33
    $region32: #{tpu_custom_call.1} parent=1 // pred_region
      %111 = dma.done [#allocation3], 256
    $region33: #{tpu_custom_call.1} parent=1 // pred_fallthru
      _
    %112 = vsyncpa [#allocation3], 1
    %113 = vsyncpa [#allocation4], 1
    %114 = vsyncpa [#allocation6], 1

</llo_original>
